<compile_context>
chip_gen: v6e
topology: v6e:2x2x1
jax: 0.10.0
libtpu: 0.0.40
codegen_flags: <defaults>
</compile_context>

<pallas_src>
import jax
import jax.numpy as jnp
from jax.experimental import pallas as pl
from jax.experimental.pallas import tpu as pltpu


def _wsam_kernel(w_ref, b_ref, x_ref, hg_ref, aw_ref):
    # w_ref : (1, F)      linear weight row (VMEM, f32)
    # b_ref : (1,)        linear bias (SMEM scalar, f32)
    # x_ref : (gb, N, F)  node features for gb graphs (native dtype)
    # hg_ref: (gb, 2, F)  [:,0,:] = weighted sum, [:,1,:] = max
    # aw_ref: (gb, N)     pre-sigmoid atom weights (reshaped to (G,N,1) outside)
    x = x_ref[...]                                   # keep native dtype (bf16/f32)
    w_row = w_ref[0].astype(x.dtype)                 # (F,)
    b = b_ref[0]                                     # f32 scalar

    # Linear(in_feats, 1): VPU broadcast-multiply + lane reduce, f32 accumulate.
    logits = jnp.sum(x * w_row, axis=-1, dtype=jnp.float32) + b      # (gb, N)
    wts = jax.nn.sigmoid(logits)                                      # (gb, N) f32

    # Weighted sum / max over the node (sublane) axis; accumulate sums in f32.
    h_sum = jnp.sum(wts.astype(x.dtype)[:, :, None] * x, axis=1,
                    dtype=jnp.float32)                                # (gb, F)
    h_max = jnp.max(x, axis=1).astype(jnp.float32)                    # (gb, F)

    # Two full-F, unmasked store streams (no in-kernel concatenate).
    hg_ref[:, 0, :] = h_sum.astype(hg_ref.dtype)
    hg_ref[:, 1, :] = h_max.astype(hg_ref.dtype)
    aw_ref[...] = logits.astype(aw_ref.dtype)


def _vmem_limit_bytes():
    """Generation-aware scoped-VMEM limit (~half of physical capacity)."""
    try:
        cap = int(pltpu.get_tpu_info().vmem_capacity_bytes)
    except Exception:
        cap = 64 * 1024 * 1024          # conservative (v7x physical size)
    # v5e/v6e: 128 MiB -> 64 MiB scope; v7x: 64 MiB -> 32 MiB scope.
    return max(16 * 1024 * 1024, min(cap // 2, 64 * 1024 * 1024))


def _pick_graphs_per_block(G, N, F, itemsize, vmem_limit):
    """Pick gb (graphs per grid step) from the VMEM budget."""
    # Per-graph working set: double-buffered native-dtype input block (2x) plus
    # ~2 elementwise temps in the input dtype, plus small f32 logits/sigmoid
    # rows and double-buffered outputs.
    per_graph = 4 * N * F * itemsize + 2 * N * 4 + 2 * (2 * F + N) * 4
    usable = int(vmem_limit * 0.5)      # headroom for compiler scratch / spills
    gb = max(1, usable // max(1, per_graph))
    if G >= 32:
        # Keep the grid at >= 4 steps so the DMA pipeline overlaps compute and
        # v7x's second TensorCore (parallel axis) gets work.
        gb = min(gb, pl.cdiv(G, 4))
    if gb >= G:
        return G                        # tiny batch: one whole-batch block
    if gb >= 8:
        gb = (gb // 8) * 8              # sublane-align the 2-D output blocks
    # gb in 1..7 only when a single graph nearly fills the budget.
    return int(gb)


def weighted_sum_and_max(feats, weight, bias, get_node_weight=False):
    """feats: [G, N, F]; weight: [1, F] (PyTorch Linear layout); bias: [1]."""
    # TODO(synk): assumes uniform node counts per graph; real DGL batches with
    # ragged/padded segments need per-graph length masks (-inf for max, 0 for sum).
    G, N, F = feats.shape
    itemsize = jnp.dtype(feats.dtype).itemsize
    vmem_limit = _vmem_limit_bytes()
    gb = _pick_graphs_per_block(G, N, F, itemsize, vmem_limit)
    grid = (pl.cdiv(G, gb),)            # partial last block handled by Pallas

    w_row = weight.reshape(1, F).astype(jnp.float32)     # (1, F), lane-dense
    b = bias.reshape(1).astype(jnp.float32)              # (1,) -> SMEM scalar

    hg, aw = pl.pallas_call(
        _wsam_kernel,
        out_shape=(
            jax.ShapeDtypeStruct((G, 2, F), jnp.float32),   # [sum | max]
            jax.ShapeDtypeStruct((G, N), jnp.float32),      # atom weights
        ),
        grid_spec=pltpu.PrefetchScalarGridSpec(
            num_scalar_prefetch=0,
            grid=grid,
            in_specs=[
                pl.BlockSpec((1, F), lambda g: (0, 0)),               # weight row
                pl.BlockSpec(memory_space=pltpu.MemorySpace.SMEM),    # bias scalar
                pl.BlockSpec((gb, N, F), lambda g: (g, 0, 0)),        # gb graphs
            ],
            out_specs=[
                pl.BlockSpec((gb, 2, F), lambda g: (g, 0, 0)),
                pl.BlockSpec((gb, N), lambda g: (g, 0)),
            ],
        ),
        compiler_params=pltpu.CompilerParams(
            dimension_semantics=("parallel",),
            vmem_limit_bytes=vmem_limit,
        ),
    )(w_row, b, feats)

    hg = hg.reshape(G, 2 * F)           # free row-major reshape: [sum | max]
    if get_node_weight:
        return hg, aw.reshape(G, N, 1)
    return hg


def _reference(feats, weight, bias):
    feats = feats.astype(jnp.float32)
    logits = jnp.einsum("gnf,f->gn", feats, weight[0].astype(jnp.float32))
    logits = logits + bias[0]
    w = jax.nn.sigmoid(logits)[..., None]                  # (G, N, 1)
    h_sum = jnp.sum(w * feats, axis=1)                     # (G, F)
    h_max = jnp.max(feats, axis=1)                         # (G, F)
    return jnp.concatenate([h_sum, h_max], axis=1), logits[..., None]


if __name__ == "__main__":
    G, N, F = 2, 8, 32  # 2 graphs, 8 nodes each, in_feats = 32
    key = jax.random.PRNGKey(0)
    k_x, k_w, k_b = jax.random.split(key, 3)

    feats = jax.random.normal(k_x, (G, N, F), dtype=jnp.float32)
    # Linear(in_feats, 1) params (PyTorch layout: weight [1, F], bias [1])
    bound = 1.0 / (F ** 0.5)
    weight = jax.random.uniform(k_w, (1, F), jnp.float32, -bound, bound)
    bias = jax.random.uniform(k_b, (1,), jnp.float32, -bound, bound)

    hg, aw = weighted_sum_and_max(feats, weight, bias, get_node_weight=True)
    hg = jax.block_until_ready(hg)
    aw = jax.block_until_ready(aw)

    hg_ref, aw_ref = _reference(feats, weight, bias)
    assert hg.shape == (G, 2 * F) and aw.shape == (G, N, 1)
    assert jnp.allclose(hg, hg_ref, atol=1e-5, rtol=1e-5)
    assert jnp.allclose(aw, aw_ref, atol=1e-5, rtol=1e-5)

    print("KERNEL_OK")
</pallas_src>

<mosaic_0001>
module attributes {stable_mosaic.version = 11 : i64} {
  func.func @_wsam_kernel(%arg0: i32, %arg1: memref<1x32xf32, #tpu.memory_space<vmem>>, %arg2: memref<1xf32, #tpu.memory_space<smem>>, %arg3: memref<2x8x32xf32, #tpu.memory_space<vmem>>, %arg4: memref<2x2x32xf32, #tpu.memory_space<vmem>>, %arg5: memref<2x8xf32, #tpu.memory_space<vmem>>) attributes {dimension_semantics = [#tpu.dimension_semantics<parallel>], iteration_bounds = array<i64: 1>, scalar_prefetch = 0 : i64, scratch_operands = 0 : i64, tpu.core_type = #tpu.core_type<tc>, window_params = [{pipeline_mode = #tpu.pipeline_mode<synchronous>, transform_indices = @transform_0, window_bounds = array<i64: 1, 32>}, {transform_indices = @transform_1, window_bounds = array<i64: 1>}, {transform_indices = @transform_2, window_bounds = array<i64: 2, 8, 32>}, {transform_indices = @transform_3, window_bounds = array<i64: 2, 2, 32>}, {transform_indices = @transform_4, window_bounds = array<i64: 2, 8>}]} {
    %c0 = arith.constant 0 : index
    %c0_0 = arith.constant 0 : index
    %c0_1 = arith.constant 0 : index
    %0 = vector.load %arg3[%c0, %c0_0, %c0_1] : memref<2x8x32xf32, #tpu.memory_space<vmem>>, vector<2x8x32xf32>
    %c0_2 = arith.constant 0 : index
    %c0_3 = arith.constant 0 : index
    %1 = vector.load %arg1[%c0_2, %c0_3] : memref<1x32xf32, #tpu.memory_space<vmem>>, vector<1x32xf32>
    %2 = vector.shape_cast %1 : vector<1x32xf32> to vector<32xf32>
    %c0_4 = arith.constant 0 : index
    %3 = memref.load %arg2[%c0_4] : memref<1xf32, #tpu.memory_space<smem>>
    %4 = vector.shape_cast %2 : vector<32xf32> to vector<1x1x32xf32>
    %5 = vector.broadcast %4 : vector<1x1x32xf32> to vector<2x8x32xf32>
    %6 = arith.mulf %0, %5 : vector<2x8x32xf32>
    %cst = arith.constant dense<0.000000e+00> : vector<2x8xf32>
    %7 = vector.multi_reduction <add>, %6, %cst [2] : vector<2x8x32xf32> to vector<2x8xf32>
    %8 = vector.broadcast %3 : f32 to vector<2x8xf32>
    %9 = arith.addf %7, %8 : vector<2x8xf32>
    %10 = arith.negf %9 : vector<2x8xf32>
    %11 = math.exp %10 : vector<2x8xf32>
    %cst_5 = arith.constant 1.000000e+00 : f32
    %12 = vector.broadcast %cst_5 : f32 to vector<2x8xf32>
    %13 = arith.addf %12, %11 : vector<2x8xf32>
    %14 = arith.divf %12, %13 : vector<2x8xf32>
    %15 = vector.shape_cast %14 : vector<2x8xf32> to vector<2x8x1xf32>
    %16 = vector.broadcast %15 : vector<2x8x1xf32> to vector<2x8x32xf32>
    %17 = arith.mulf %16, %0 : vector<2x8x32xf32>
    %cst_6 = arith.constant dense<0.000000e+00> : vector<2x32xf32>
    %18 = vector.multi_reduction <add>, %17, %cst_6 [1] : vector<2x8x32xf32> to vector<2x32xf32>
    %cst_7 = arith.constant dense<0xFF800000> : vector<2x32xf32>
    %19 = vector.multi_reduction <maximumf>, %0, %cst_7 [1] : vector<2x8x32xf32> to vector<2x32xf32>
    %c0_8 = arith.constant 0 : index
    %c0_9 = arith.constant 0 : index
    %c0_10 = arith.constant 0 : index
    %20 = vector.load %arg4[%c0_8, %c0_9, %c0_10] : memref<2x2x32xf32, #tpu.memory_space<vmem>>, vector<2x1x32xf32>
    %21 = vector.shape_cast %20 : vector<2x1x32xf32> to vector<2x32xf32>
    %22 = vector.shape_cast %18 : vector<2x32xf32> to vector<2x1x32xf32>
    tpu.vector_store %arg4[%c0_8, %c0_9, %c0_10], %22 {strides = array<i32>} : memref<2x2x32xf32, #tpu.memory_space<vmem>>, vector<2x1x32xf32>,
    %c0_11 = arith.constant 0 : index
    %c1 = arith.constant 1 : index
    %c0_12 = arith.constant 0 : index
    %23 = vector.load %arg4[%c0_11, %c1, %c0_12] : memref<2x2x32xf32, #tpu.memory_space<vmem>>, vector<2x1x32xf32>
    %24 = vector.shape_cast %23 : vector<2x1x32xf32> to vector<2x32xf32>
    %25 = vector.shape_cast %19 : vector<2x32xf32> to vector<2x1x32xf32>
    tpu.vector_store %arg4[%c0_11, %c1, %c0_12], %25 {strides = array<i32>} : memref<2x2x32xf32, #tpu.memory_space<vmem>>, vector<2x1x32xf32>,
    %c0_13 = arith.constant 0 : index
    %c0_14 = arith.constant 0 : index
    %26 = vector.load %arg5[%c0_13, %c0_14] : memref<2x8xf32, #tpu.memory_space<vmem>>, vector<2x8xf32>
    tpu.vector_store %arg5[%c0_13, %c0_14], %9 {strides = array<i32>} : memref<2x8xf32, #tpu.memory_space<vmem>>, vector<2x8xf32>,
    return
  }
  func.func @transform_0(%arg0: i32) -> (i32, i32) {
    %c0_i32 = arith.constant 0 : i32
    %c0_i32_0 = arith.constant 0 : i32
    %c0_i32_1 = arith.constant 0 : i32
    return %c0_i32, %c0_i32_0 : i32, i32
  }
  func.func @transform_1(%arg0: i32) -> i32 {
    %c0_i32 = arith.constant 0 : i32
    %c0_i32_0 = arith.constant 0 : i32
    return %c0_i32 : i32
  }
  func.func @transform_2(%arg0: i32) -> (i32, i32, i32) {
    %c0_i32 = arith.constant 0 : i32
    %c0_i32_0 = arith.constant 0 : i32
    %c0_i32_1 = arith.constant 0 : i32
    return %arg0, %c0_i32, %c0_i32_0 : i32, i32, i32
  }
  func.func @transform_3(%arg0: i32) -> (i32, i32, i32) {
    %c0_i32 = arith.constant 0 : i32
    %c0_i32_0 = arith.constant 0 : i32
    %c0_i32_1 = arith.constant 0 : i32
    return %arg0, %c0_i32, %c0_i32_0 : i32, i32, i32
  }
  func.func @transform_4(%arg0: i32) -> (i32, i32) {
    %c0_i32 = arith.constant 0 : i32
    %c0_i32_0 = arith.constant 0 : i32
    return %arg0, %c0_i32 : i32, i32
  }
}

</mosaic_0001>

<llo_original>
// kernel: tpu_custom_call.1
$region0: #{tpu_custom_call.1}
  #allocation0 [shape = 'u32[]', space=smem, size = 0x4, offset = 0x4, fixed_abs, tag = 'smem constant byte address 0x4 - core index']
  #allocation1 [shape = 'u32[144,128]{1,0:T(1,128)}', space=vmem, size = 0x12000, scoped, tag = 'internal scratch']
  #allocation2 [shape = 'f32[1]{0:T(128)S(6)}', space=smem, size = 0x200, scoped, tag = 'scoped memory for tpu_custom_call.1']
  %s0 = inlined_call_operand.vmem [shape: f32[1,32], index: 0, kind: input, shape index: {}]
  %s1 = inlined_call_operand.<no memory space> [shape: f32[1], index: 1, kind: input, shape index: {}]
  %s2 = inlined_call_operand.hbm [shape: f32[2,8,32], index: 2, kind: input, shape index: {}]
  %s3 = inlined_call_operand.hbm [shape: f32[2,2,32], index: 3, kind: output, shape index: {0}]
  %s4 = inlined_call_operand.hbm [shape: f32[2,8], index: 4, kind: output, shape index: {1}]
  %5 = xla_tuple %s3, %s4
  %s6 = sld [smem:[#allocation0]]
  $region34: #{tpu_custom_call.1} parent=0
    _
  %s8 = ssub.s32 1, %s6
  %s9 = scalar_select 0, %s8, %s6
  %10 = sst [smem:[#allocation2]] %s1
  $region1: #{tpu_custom_call.1} parent=0
    #allocation3 [shape = 'u8[8192]{0}', space=vmem, size = 0x2000, scoped, tag = 'input window, operand 2, single buffered']
    #allocation4 [shape = 's32[1]{0}', space=sflag, size = 0x4, scoped, tag = 'scoped memory for tpu_custom_call.1']
    #allocation5 [shape = 's32[1]{0}', space=sflag, size = 0x4, scoped, tag = 'scoped memory for tpu_custom_call.1']
    #allocation6 [shape = 'u8[2048]{0}', space=vmem, size = 0x800, scoped, tag = 'output window, operand 0, single buffered']
    #allocation7 [shape = 'u8[1024]{0}', space=vmem, size = 0x400, scoped, tag = 'output window, operand 1, single buffered']
    #allocation8 [shape = 's32[1]{0}', space=sflag, size = 0x4, scoped, tag = 'scoped memory for tpu_custom_call.1']
    %11 = vsyncpa [#allocation4], 0
    %12 = vsyncpa [#allocation5], 0
    %13 = vsyncpa [#allocation8], 0
    // Predicated region
    $region2: #{tpu_custom_call.1} parent=1 // pred_check
      _
    $region3: #{tpu_custom_call.1} parent=1 // pred_check_branch
      %15 = sbr.rel (0) target = $region5
    $region4: #{tpu_custom_call.1} parent=1 // pred_region
      _
    $region5: #{tpu_custom_call.1} parent=1 // pred_fallthru
      _
    // Predicated region
    $region6: #{tpu_custom_call.1} parent=1 // pred_check
      _
    $region7: #{tpu_custom_call.1} parent=1 // pred_check_branch
      %17 = sbr.rel (0) target = $region9
    $region8: #{tpu_custom_call.1} parent=1 // pred_region
      _
    $region9: #{tpu_custom_call.1} parent=1 // pred_fallthru
      _
    // Predicated region
    $region10: #{tpu_custom_call.1} parent=1 // pred_check
      _
    $region11: #{tpu_custom_call.1} parent=1 // pred_check_branch
      %19 = sbr.rel (0) target = $region13
    $region12: #{tpu_custom_call.1} parent=1 // pred_region
      %s21 = ssub.s32 256, 256
      %22 = vsyncadd [#allocation4], %s21
      %s23 = sshll.u32 [#allocation3], 4
      %s24 = int_to_ptr.vmem [resolvable:$true] %s23
      %29 = dma.hbm_to_vmem [thread:$0]  %s2, 256, %s24, [#allocation4], 128, 128, 8
    $region13: #{tpu_custom_call.1} parent=1 // pred_fallthru
      _
    // Predicated region
    $region14: #{tpu_custom_call.1} parent=1 // pred_check
      _
    $region15: #{tpu_custom_call.1} parent=1 // pred_check_branch
      %31 = sbr.rel (0) target = $region17
    $region16: #{tpu_custom_call.1} parent=1 // pred_region
      %32 = dma.done [#allocation4], 256
    $region17: #{tpu_custom_call.1} parent=1 // pred_fallthru
      _
    %v33 = vld [vmem:[#allocation3] sm:$0xff]
    %v34 = vld [vmem:[#allocation3 + $0x8] sm:$0xff]
    %v35 = vld [vmem:[%s0] sm:$0x1]
    %s36 = sld [smem:[#allocation2]]
    %v38 = vlaneseq
    %v39 = vshrl.u32 %v38, 7
    %v40 = vsub.s32 0, %v39
    %v41 = vrot.slane %v35, %v40
    %v43 = vmul.f32 %v33, %v41
    %v44 = vmul.f32 %v34, %v41
    %vm45 = vcmask 261120
    %v46 = vsel %vm45, %v43, 0.0
    %47 = vadd.xlane.f32.xlu0 %v46
    %v48 = vpop.xlane.xlu0 %47
    %v49 = vsel %vm45, %v44, 0.0
    %50 = vadd.xlane.f32.xlu0 %v49
    %v51 = vpop.xlane.xlu0 %50
    %v52 = vstv %s36
    %v53 = vadd.f32 %v48, %v52
    %v54 = vadd.f32 %v51, %v52
    %v55 = vxor.u32 %v53, 2147483648
    %v56 = vxor.u32 %v54, 2147483648
    %v57 = vmul.f32 %v55, 1.442695
    %v58 = vpow.pop %v57
    %v59 = vmul.f32 %v56, 1.442695
    %v60 = vpow.pop %v59
    %v61 = vadd.f32 %v58, 1.0
    %v62 = vadd.f32 %v60, 1.0
    %v63 = vrcp.pop %v61
    %v64 = vmul.f32 1.0, %v63
    %v65 = vrcp.pop %v62
    %v66 = vmul.f32 1.0, %v65
    %v67 = vmul.f32 %v64, %v33
    %v68 = vmul.f32 %v66, %v34
    %v69 = vsel %vm45, %v67, 0.0
    %v70 = vrot.slane %v69, 4
    %v71 = vadd.f32 %v69, %v70
    %v72 = vrot.slane %v71, 2
    %v73 = vadd.f32 %v71, %v72
    %v74 = vrot.slane %v73, 1
    %v75 = vadd.f32 %v73, %v74
    %v76 = vsel %vm45, %v68, 0.0
    %v77 = vrot.slane %v76, 4
    %v78 = vadd.f32 %v76, %v77
    %v79 = vrot.slane %v78, 2
    %v80 = vadd.f32 %v78, %v79
    %v81 = vrot.slane %v80, 1
    %v82 = vadd.f32 %v80, %v81
    %v83 = vsel %vm45, %v33, -inf
    %v84 = vrot.slane %v83, 4
    %v85 = vmax.f32 %v83, %v84
    %v86 = vrot.slane %v85, 2
    %v87 = vmax.f32 %v85, %v86
    %v88 = vrot.slane %v87, 1
    %v89 = vmax.f32 %v87, %v88
    %v90 = vsel %vm45, %v34, -inf
    %v91 = vrot.slane %v90, 4
    %v92 = vmax.f32 %v90, %v91
    %v93 = vrot.slane %v92, 2
    %v94 = vmax.f32 %v92, %v93
    %v95 = vrot.slane %v94, 1
    %v96 = vmax.f32 %v94, %v95
    %vm97 = vcmask 253952
    %98 = vst.msk [vmem:[#allocation6] sm:$0x1] %vm97, %v75
    %99 = vst.msk [vmem:[#allocation6 + $0x2] sm:$0x1] %vm97, %v82
    %100 = vst.msk [vmem:[#allocation6 + $0x1] sm:$0x1] %vm97, %v89
    %101 = vst.msk [vmem:[#allocation6 + $0x3] sm:$0x1] %vm97, %v96
    %v104 = vlaneseq
    %v105 = vand.u32 %v104, 127
    %v106 = vlaneseq
    %v107 = vshrl.u32 %v106, 7
    %v108 = vsub.s32 %v105, %v107
    %v109 = vrot.slane %v53, %v108
    %v110 = vlaneseq
    %v111 = vshrl.u32 %v110, 7
    %v112 = vsub.s32 %v105, %v111
    %v113 = vrot.slane %v54, %v112
    %vm114 = vcmask 1041409
    %v115 = vsel %vm114, %v113, %v109
    %vm117 = vcmask 58368
    %118 = vst.msk [vmem:[#allocation7] sm:$0x3] %vm117, %v115
    // Predicated region
    $region18: #{tpu_custom_call.1} parent=1 // pred_check
      _
    $region19: #{tpu_custom_call.1} parent=1 // pred_check_branch
      %120 = sbr.rel (0) target = $region21
    $region20: #{tpu_custom_call.1} parent=1 // pred_region
      %s122 = ssub.s32 64, 64
      %123 = vsyncadd [#allocation5], %s122
      %s124 = sshll.u32 [#allocation6], 4
      %s125 = int_to_ptr.vmem [resolvable:$true] %s124
      %130 = dma.vmem_to_hbm [thread:$0]  %s125, 64, %s3, [#allocation5], 32, 32, 2
    $region21: #{tpu_custom_call.1} parent=1 // pred_fallthru
      _
    // Predicated region
    $region22: #{tpu_custom_call.1} parent=1 // pred_check
      _
    $region23: #{tpu_custom_call.1} parent=1 // pred_check_branch
      %132 = sbr.rel (0) target = $region25
    $region24: #{tpu_custom_call.1} parent=1 // pred_region
      %s134 = ssub.s32 32, 32
      %135 = vsyncadd [#allocation8], %s134
      %s137 = sshll.u32 [#allocation7], 4
      %s138 = int_to_ptr.vmem [resolvable:$true] %s137
      %140 = dma.vmem_to_hbm [thread:$0]  %s138, 32, %s4, [#allocation8]
    $region25: #{tpu_custom_call.1} parent=1 // pred_fallthru
      _
    // Predicated region
    $region26: #{tpu_custom_call.1} parent=1 // pred_check
      _
    $region27: #{tpu_custom_call.1} parent=1 // pred_check_branch
      %142 = sbr.rel (0) target = $region29
    $region28: #{tpu_custom_call.1} parent=1 // pred_region
      %143 = dma.done [#allocation5], 64
    $region29: #{tpu_custom_call.1} parent=1 // pred_fallthru
      _
    // Predicated region
    $region30: #{tpu_custom_call.1} parent=1 // pred_check
      _
    $region31: #{tpu_custom_call.1} parent=1 // pred_check_branch
      %145 = sbr.rel (0) target = $region33
    $region32: #{tpu_custom_call.1} parent=1 // pred_region
      %146 = dma.done [#allocation8], 32
    $region33: #{tpu_custom_call.1} parent=1 // pred_fallthru
      _
    %147 = vsyncpa [#allocation4], 1
    %148 = vsyncpa [#allocation5], 1
    %149 = vsyncpa [#allocation8], 1

</llo_original>
